<compile_context>
chip_gen: v7x
topology: tpu7x:2x2x1
jax: 0.10.0
libtpu: 0.0.40
codegen_flags: <defaults>
</compile_context>

<pallas_src>
import math

import jax
import jax.numpy as jnp
from jax import lax
from jax.experimental import pallas as pl
from jax.experimental.pallas import tpu as pltpu

BN_EPS = 1e-5


def _attention_kernel(z_ref, c_ref, e_ref, w1d_ref, w1e_ref, b1_ref,
                      w2_ref, b2_ref, w3_ref, b3_ref, o_ref):
    """Fused forward.

    z_ref : (B, dec)   c_ref : (B, dec)   e_ref : (B, E)     (natural layout)
    w1d   : (E, dec)   w1e   : (E, E)     b1 : (E, 1)
    w2    : (E//2, E)  b2    : (E//2, 1)
    w3    : (E//2, 1)  b3    : (1, 1)
    o_ref : (2, B)     row 0 = z-path probabilities, row 1 = c-path.
    """
    B = z_ref.shape[0]
    inv_n = jnp.float32(1.0 / (2 * B))

    # Lane-concatenate the z and c paths into one block: lanes [0,B) = z, [B,2B) = c.
    nei = jnp.concatenate([z_ref[...], c_ref[...]], axis=0)          # (2B, dec)
    e = e_ref[...]                                                   # (B, E)

    # Contract on the feature dim of BOTH operands ("NT" matmul) -> transposed
    # (feat, batch) activations with no explicit transpose anywhere.
    nt = (((1,), (1,)), ((), ()))

    # ---- layer 1: one push for [z|c], embed @ W1 computed once and shared ----
    h1 = lax.dot_general(w1d_ref[...], nei, nt,
                         preferred_element_type=jnp.float32)          # (E, 2B)
    emb1 = lax.dot_general(w1e_ref[...], e, nt,
                           preferred_element_type=jnp.float32)        # (E, B)
    h1 = jnp.maximum(
        h1 + jnp.concatenate([emb1, emb1], axis=-1) + b1_ref[...], 0.0)

    # ---- BatchNorm1d (training mode, biased variance), single-pass stats ----
    s1 = jnp.sum(h1, axis=-1, keepdims=True)
    q1 = jnp.sum(h1 * h1, axis=-1, keepdims=True)
    mu1 = s1 * inv_n
    var1 = jnp.maximum(q1 * inv_n - mu1 * mu1, 0.0)   # clamp: cancellation guard
    u1 = (h1 - mu1) * lax.rsqrt(var1 + BN_EPS)

    # ---- layer 2 + BatchNorm ----
    h2 = jnp.maximum(
        jnp.dot(w2_ref[...], u1, preferred_element_type=jnp.float32)
        + b2_ref[...], 0.0)                                           # (E//2, 2B)
    s2 = jnp.sum(h2, axis=-1, keepdims=True)
    q2 = jnp.sum(h2 * h2, axis=-1, keepdims=True)
    mu2 = s2 * inv_n
    var2 = jnp.maximum(q2 * inv_n - mu2 * mu2, 0.0)
    u2 = (h2 - mu2) * lax.rsqrt(var2 + BN_EPS)

    # ---- layer 3 (width 1): VPU multiply + sublane reduce, skip the MXU ----
    prod = u2 * w3_ref[...]                                           # (E//2, 2B)
    logit_z = jnp.sum(prod[:, :B], axis=0, keepdims=True)             # (1, B)
    logit_c = jnp.sum(prod[:, B:], axis=0, keepdims=True)             # (1, B)
    logits = jnp.concatenate([logit_z, logit_c], axis=0) + b3_ref[...]  # (2, B)

    # ---- softmax over the batch (lane axis), both positions in one pass ----
    m = jnp.max(logits, axis=-1, keepdims=True)
    ex = jnp.exp(logits - m)
    p = ex * pl.reciprocal(jnp.sum(ex, axis=-1, keepdims=True), approx=True)
    o_ref[...] = p                                                    # one lane-dense store


def attention_forward(params, embed_z, embed_c, embed):
    """Fused Attention.forward. Returns (B, 2, 1) like the PyTorch module."""
    B = embed.shape[0]

    vmem = pl.BlockSpec(memory_space=pltpu.MemorySpace.VMEM)
    out = pl.pallas_call(
        _attention_kernel,
        out_shape=jax.ShapeDtypeStruct((2, B), jnp.float32),
        in_specs=[vmem] * 10,
        out_specs=vmem,
        compiler_params=pltpu.CompilerParams(
            # v5e default scoped VMEM is 16 MiB; raise it (safe on v6e/v7x too).
            vmem_limit_bytes=32 * 1024 * 1024),
    )(embed_z, embed_c, embed,
      params["w1_dec"], params["w1_emb"], params["b1"],
      params["w2"], params["b2"], params["w3"], params["b3"])

    # (2, B) lane-dense kernel output -> (B, 2, 1) module output.  Callers that
    # can consume (2, B) directly should skip this tiny post-kernel transpose.
    return out.T[:, :, None]


def init_params(key, embed_dim, dec_embed_dim):
    """Deterministic init mirroring the PyTorch module's parameter shapes.

    Weights stay in PyTorch (out_features, in_features) layout, which is what
    the transposed kernel wants; mlp_1's weight is pre-split into its dec /
    embed column blocks so the kernel can share the embed @ W1 product.
    """
    def xavier(k, fan_out, fan_in):
        bound = math.sqrt(6.0 / (fan_in + fan_out))
        return jax.random.uniform(k, (fan_out, fan_in), jnp.float32, -bound, bound)

    def lin_bias(k, fan_in, fan_out):
        bound = 1.0 / math.sqrt(fan_in)
        return jax.random.uniform(k, (fan_out, 1), jnp.float32, -bound, bound)

    ks = jax.random.split(key, 6)
    E, dec = embed_dim, dec_embed_dim
    w1_full = xavier(ks[0], E, dec + E)          # PyTorch mlp_1.weight (E, dec+E)
    return {
        "w1_dec": w1_full[:, :dec],              # (E, dec)
        "w1_emb": w1_full[:, dec:],              # (E, E)
        "b1": lin_bias(ks[1], dec + E, E),       # (E, 1)
        "w2": xavier(ks[2], E // 2, E),          # (E//2, E)
        "b2": lin_bias(ks[3], E, E // 2),        # (E//2, 1)
        "w3": xavier(ks[4], 1, E // 2).T,        # (E//2, 1)
        "b3": lin_bias(ks[5], E // 2, 1),        # (1, 1)
    }


def _reference_forward(params, embed_z, embed_c, embed):
    """Pure-JAX reference of the PyTorch forward (training-mode BatchNorm)."""
    B = embed.shape[0]
    w1 = jnp.concatenate([params["w1_dec"], params["w1_emb"]], axis=1)   # (E, dec+E)
    b1 = params["b1"][:, 0]
    w2, b2 = params["w2"], params["b2"][:, 0]
    w3, b3 = params["w3"][:, 0], params["b3"][0, 0]

    row_z = jnp.concatenate([embed_z, embed], axis=-1)
    row_c = jnp.concatenate([embed_c, embed], axis=-1)
    x = jnp.stack([row_z, row_c], axis=1).reshape(2 * B, -1)

    def bn(h):
        mu = jnp.mean(h, axis=0, keepdims=True)
        var = jnp.mean((h - mu) ** 2, axis=0, keepdims=True)
        return (h - mu) / jnp.sqrt(var + BN_EPS)

    u1 = bn(jax.nn.relu(x @ w1.T + b1))
    u2 = bn(jax.nn.relu(u1 @ w2.T + b2))
    logits = (u2 @ w3[:, None] + b3).reshape(B, 2, 1)
    return jax.nn.softmax(logits, axis=0)


if __name__ == "__main__":
    embed_dim = 32
    dec_embed_dim = embed_dim // 2  # required for the .view() calls in forward to be consistent
    B = 4

    key = jax.random.PRNGKey(0)
    k_p, k_z, k_c, k_e = jax.random.split(key, 4)
    params = init_params(k_p, embed_dim, dec_embed_dim)

    embed_z = jax.random.normal(k_z, (B, dec_embed_dim), jnp.float32)
    embed_c = jax.random.normal(k_c, (B, dec_embed_dim), jnp.float32)
    embed = jax.random.normal(k_e, (B, embed_dim), jnp.float32)

    out = attention_forward(params, embed_z, embed_c, embed)
    out = jax.block_until_ready(out)

    ref = _reference_forward(params, embed_z, embed_c, embed)
    assert out.shape == (B, 2, 1)
    # Tolerance accounts for the EUP approximate reciprocal in the softmax and
    # the single-pass E[h^2]-mean^2 BatchNorm variance (both well below 1e-3).
    assert jnp.allclose(out, ref, atol=1e-3, rtol=1e-3), "mismatch vs reference"

    # TODO(synk): BatchNorm running_mean/running_var updates are not emitted
    # (forward-only reproduction); add a side output if a training loop needs them.
    print("KERNEL_OK")
</pallas_src>

<mosaic_0001>
module attributes {stable_mosaic.version = 11 : i64} {
  func.func @_attention_kernel(%arg0: memref<4x16xf32, #tpu.memory_space<vmem>>, %arg1: memref<4x16xf32, #tpu.memory_space<vmem>>, %arg2: memref<4x32xf32, #tpu.memory_space<vmem>>, %arg3: memref<32x16xf32, #tpu.memory_space<vmem>>, %arg4: memref<32x32xf32, #tpu.memory_space<vmem>>, %arg5: memref<32x1xf32, #tpu.memory_space<vmem>>, %arg6: memref<16x32xf32, #tpu.memory_space<vmem>>, %arg7: memref<16x1xf32, #tpu.memory_space<vmem>>, %arg8: memref<16x1xf32, #tpu.memory_space<vmem>>, %arg9: memref<1x1xf32, #tpu.memory_space<vmem>>, %arg10: memref<2x4xf32, #tpu.memory_space<vmem>>) attributes {dimension_semantics = [], scalar_prefetch = 0 : i64, scratch_operands = 0 : i64, tpu.core_type = #tpu.core_type<tc>} {
    %c0 = arith.constant 0 : index
    %c0_0 = arith.constant 0 : index
    %0 = vector.load %arg0[%c0, %c0_0] : memref<4x16xf32, #tpu.memory_space<vmem>>, vector<4x16xf32>
    %c0_1 = arith.constant 0 : index
    %c0_2 = arith.constant 0 : index
    %1 = vector.load %arg1[%c0_1, %c0_2] : memref<4x16xf32, #tpu.memory_space<vmem>>, vector<4x16xf32>
    %2 = tpu.concatenate %0, %1 in 0 : vector<4x16xf32>, vector<4x16xf32> -> vector<8x16xf32>
    %c0_3 = arith.constant 0 : index
    %c0_4 = arith.constant 0 : index
    %3 = vector.load %arg2[%c0_3, %c0_4] : memref<4x32xf32, #tpu.memory_space<vmem>>, vector<4x32xf32>
    %c0_5 = arith.constant 0 : index
    %c0_6 = arith.constant 0 : index
    %4 = vector.load %arg3[%c0_5, %c0_6] : memref<32x16xf32, #tpu.memory_space<vmem>>, vector<32x16xf32>
    %cst = arith.constant dense<0.000000e+00> : vector<32x8xf32>
    %5 = tpu.matmul %4, %2, %cst {dimension_numbers = #tpu.dot_dimension_numbers<[1], [1], [0], [0], [0, 0, 1, 0], [], []>} : vector<32x16xf32>, vector<8x16xf32>, vector<32x8xf32> -> vector<32x8xf32>
    %c0_7 = arith.constant 0 : index
    %c0_8 = arith.constant 0 : index
    %6 = vector.load %arg4[%c0_7, %c0_8] : memref<32x32xf32, #tpu.memory_space<vmem>>, vector<32x32xf32>
    %cst_9 = arith.constant dense<0.000000e+00> : vector<32x4xf32>
    %7 = tpu.matmul %6, %3, %cst_9 {dimension_numbers = #tpu.dot_dimension_numbers<[1], [1], [0], [0], [0, 0, 1, 0], [], []>} : vector<32x32xf32>, vector<4x32xf32>, vector<32x4xf32> -> vector<32x4xf32>
    %8 = tpu.concatenate %7, %7 in 1 : vector<32x4xf32>, vector<32x4xf32> -> vector<32x8xf32>
    %9 = arith.addf %5, %8 : vector<32x8xf32>
    %c0_10 = arith.constant 0 : index
    %c0_11 = arith.constant 0 : index
    %10 = vector.load %arg5[%c0_10, %c0_11] : memref<32x1xf32, #tpu.memory_space<vmem>>, vector<32x1xf32>
    %11 = vector.broadcast %10 : vector<32x1xf32> to vector<32x8xf32>
    %12 = arith.addf %9, %11 : vector<32x8xf32>
    %cst_12 = arith.constant 0.000000e+00 : f32
    %13 = vector.broadcast %cst_12 : f32 to vector<32x8xf32>
    %14 = arith.maximumf %12, %13 : vector<32x8xf32>
    %cst_13 = arith.constant dense<0.000000e+00> : vector<32xf32>
    %15 = vector.multi_reduction <add>, %14, %cst_13 [1] : vector<32x8xf32> to vector<32xf32>
    %16 = vector.shape_cast %15 : vector<32xf32> to vector<32x1xf32>
    %17 = arith.mulf %14, %14 : vector<32x8xf32>
    %cst_14 = arith.constant dense<0.000000e+00> : vector<32xf32>
    %18 = vector.multi_reduction <add>, %17, %cst_14 [1] : vector<32x8xf32> to vector<32xf32>
    %19 = vector.shape_cast %18 : vector<32xf32> to vector<32x1xf32>
    %cst_15 = arith.constant 1.250000e-01 : f32
    %20 = vector.broadcast %cst_15 : f32 to vector<32x1xf32>
    %21 = arith.mulf %16, %20 : vector<32x1xf32>
    %cst_16 = arith.constant 1.250000e-01 : f32
    %22 = vector.broadcast %cst_16 : f32 to vector<32x1xf32>
    %23 = arith.mulf %19, %22 : vector<32x1xf32>
    %24 = arith.mulf %21, %21 : vector<32x1xf32>
    %25 = arith.subf %23, %24 : vector<32x1xf32>
    %cst_17 = arith.constant 0.000000e+00 : f32
    %26 = vector.broadcast %cst_17 : f32 to vector<32x1xf32>
    %27 = arith.maximumf %25, %26 : vector<32x1xf32>
    %28 = vector.broadcast %21 : vector<32x1xf32> to vector<32x8xf32>
    %29 = arith.subf %14, %28 : vector<32x8xf32>
    %cst_18 = arith.constant 9.99999974E-6 : f32
    %30 = vector.broadcast %cst_18 : f32 to vector<32x1xf32>
    %31 = arith.addf %27, %30 : vector<32x1xf32>
    %32 = math.rsqrt %31 : vector<32x1xf32>
    %33 = vector.broadcast %32 : vector<32x1xf32> to vector<32x8xf32>
    %34 = arith.mulf %29, %33 : vector<32x8xf32>
    %c0_19 = arith.constant 0 : index
    %c0_20 = arith.constant 0 : index
    %35 = vector.load %arg6[%c0_19, %c0_20] : memref<16x32xf32, #tpu.memory_space<vmem>>, vector<16x32xf32>
    %cst_21 = arith.constant dense<0.000000e+00> : vector<16x8xf32>
    %36 = tpu.matmul %35, %34, %cst_21 {dimension_numbers = #tpu.dot_dimension_numbers<[1], [0], [0], [1], [0, 0, 1, 1], [], []>} : vector<16x32xf32>, vector<32x8xf32>, vector<16x8xf32> -> vector<16x8xf32>
    %c0_22 = arith.constant 0 : index
    %c0_23 = arith.constant 0 : index
    %37 = vector.load %arg7[%c0_22, %c0_23] : memref<16x1xf32, #tpu.memory_space<vmem>>, vector<16x1xf32>
    %38 = vector.broadcast %37 : vector<16x1xf32> to vector<16x8xf32>
    %39 = arith.addf %36, %38 : vector<16x8xf32>
    %cst_24 = arith.constant 0.000000e+00 : f32
    %40 = vector.broadcast %cst_24 : f32 to vector<16x8xf32>
    %41 = arith.maximumf %39, %40 : vector<16x8xf32>
    %cst_25 = arith.constant dense<0.000000e+00> : vector<16xf32>
    %42 = vector.multi_reduction <add>, %41, %cst_25 [1] : vector<16x8xf32> to vector<16xf32>
    %43 = vector.shape_cast %42 : vector<16xf32> to vector<16x1xf32>
    %44 = arith.mulf %41, %41 : vector<16x8xf32>
    %cst_26 = arith.constant dense<0.000000e+00> : vector<16xf32>
    %45 = vector.multi_reduction <add>, %44, %cst_26 [1] : vector<16x8xf32> to vector<16xf32>
    %46 = vector.shape_cast %45 : vector<16xf32> to vector<16x1xf32>
    %cst_27 = arith.constant 1.250000e-01 : f32
    %47 = vector.broadcast %cst_27 : f32 to vector<16x1xf32>
    %48 = arith.mulf %43, %47 : vector<16x1xf32>
    %cst_28 = arith.constant 1.250000e-01 : f32
    %49 = vector.broadcast %cst_28 : f32 to vector<16x1xf32>
    %50 = arith.mulf %46, %49 : vector<16x1xf32>
    %51 = arith.mulf %48, %48 : vector<16x1xf32>
    %52 = arith.subf %50, %51 : vector<16x1xf32>
    %cst_29 = arith.constant 0.000000e+00 : f32
    %53 = vector.broadcast %cst_29 : f32 to vector<16x1xf32>
    %54 = arith.maximumf %52, %53 : vector<16x1xf32>
    %55 = vector.broadcast %48 : vector<16x1xf32> to vector<16x8xf32>
    %56 = arith.subf %41, %55 : vector<16x8xf32>
    %cst_30 = arith.constant 9.99999974E-6 : f32
    %57 = vector.broadcast %cst_30 : f32 to vector<16x1xf32>
    %58 = arith.addf %54, %57 : vector<16x1xf32>
    %59 = math.rsqrt %58 : vector<16x1xf32>
    %60 = vector.broadcast %59 : vector<16x1xf32> to vector<16x8xf32>
    %61 = arith.mulf %56, %60 : vector<16x8xf32>
    %c0_31 = arith.constant 0 : index
    %c0_32 = arith.constant 0 : index
    %62 = vector.load %arg8[%c0_31, %c0_32] : memref<16x1xf32, #tpu.memory_space<vmem>>, vector<16x1xf32>
    %63 = vector.broadcast %62 : vector<16x1xf32> to vector<16x8xf32>
    %64 = arith.mulf %61, %63 : vector<16x8xf32>
    %65 = vector.extract_strided_slice %64 {offsets = [0, 0], sizes = [16, 4], strides = [1, 1]} : vector<16x8xf32> to vector<16x4xf32>
    %cst_33 = arith.constant dense<0.000000e+00> : vector<4xf32>
    %66 = vector.multi_reduction <add>, %65, %cst_33 [0] : vector<16x4xf32> to vector<4xf32>
    %67 = vector.shape_cast %66 : vector<4xf32> to vector<1x4xf32>
    %68 = vector.extract_strided_slice %64 {offsets = [0, 4], sizes = [16, 4], strides = [1, 1]} : vector<16x8xf32> to vector<16x4xf32>
    %cst_34 = arith.constant dense<0.000000e+00> : vector<4xf32>
    %69 = vector.multi_reduction <add>, %68, %cst_34 [0] : vector<16x4xf32> to vector<4xf32>
    %70 = vector.shape_cast %69 : vector<4xf32> to vector<1x4xf32>
    %71 = tpu.concatenate %67, %70 in 0 : vector<1x4xf32>, vector<1x4xf32> -> vector<2x4xf32>
    %c0_35 = arith.constant 0 : index
    %c0_36 = arith.constant 0 : index
    %72 = vector.load %arg9[%c0_35, %c0_36] : memref<1x1xf32, #tpu.memory_space<vmem>>, vector<1x1xf32>
    %73 = vector.broadcast %72 : vector<1x1xf32> to vector<2x4xf32>
    %74 = arith.addf %71, %73 : vector<2x4xf32>
    %cst_37 = arith.constant dense<0xFF800000> : vector<2xf32>
    %75 = vector.multi_reduction <maximumf>, %74, %cst_37 [1] : vector<2x4xf32> to vector<2xf32>
    %76 = vector.shape_cast %75 : vector<2xf32> to vector<2x1xf32>
    %77 = vector.broadcast %76 : vector<2x1xf32> to vector<2x4xf32>
    %78 = arith.subf %74, %77 : vector<2x4xf32>
    %79 = math.exp %78 : vector<2x4xf32>
    %cst_38 = arith.constant dense<0.000000e+00> : vector<2xf32>
    %80 = vector.multi_reduction <add>, %79, %cst_38 [1] : vector<2x4xf32> to vector<2xf32>
    %81 = vector.shape_cast %80 : vector<2xf32> to vector<2x1xf32>
    %82 = tpu.reciprocal %81 {approx = true} : vector<2x1xf32> -> vector<2x1xf32>
    %83 = vector.broadcast %82 : vector<2x1xf32> to vector<2x4xf32>
    %84 = arith.mulf %79, %83 : vector<2x4xf32>
    %c0_39 = arith.constant 0 : index
    %c0_40 = arith.constant 0 : index
    %85 = vector.load %arg10[%c0_39, %c0_40] : memref<2x4xf32, #tpu.memory_space<vmem>>, vector<2x4xf32>
    tpu.vector_store %arg10[%c0_39, %c0_40], %84 {strides = array<i32>} : memref<2x4xf32, #tpu.memory_space<vmem>>, vector<2x4xf32>,
    return
  }
}

</mosaic_0001>

<llo_original>
// kernel: tpu_custom_call.1
$region0: #{tpu_custom_call.1}
  #allocation0 [shape = 'u32[]', space=smem, size = 0x4, offset = 0x4, fixed_abs, tag = 'smem constant byte address 0x4 - core index']
  #allocation1 [shape = 'u32[144,128]{1,0:T(1,128)}', space=vmem, size = 0x12000, scoped, tag = 'internal scratch']
  #allocation2 [shape = 'f32[1,1]{1,0:T(1,128)S(1)}', space=vmem, size = 0x200, scoped, tag = 'scoped memory for tpu_custom_call.1']
  %s0 = inlined_call_operand.vmem [shape: f32[4,16], index: 0, kind: input, shape index: {}]
  %s1 = inlined_call_operand.vmem [shape: f32[4,16], index: 1, kind: input, shape index: {}]
  %s2 = inlined_call_operand.vmem [shape: f32[4,32], index: 2, kind: input, shape index: {}]
  %s3 = inlined_call_operand.vmem [shape: f32[32,16], index: 3, kind: input, shape index: {}]
  %s4 = inlined_call_operand.vmem [shape: f32[32,32], index: 4, kind: input, shape index: {}]
  %s5 = inlined_call_operand.vmem [shape: f32[32,1], index: 5, kind: input, shape index: {}]
  %s6 = inlined_call_operand.vmem [shape: f32[16,32], index: 6, kind: input, shape index: {}]
  %s7 = inlined_call_operand.vmem [shape: f32[16,1], index: 7, kind: input, shape index: {}]
  %s8 = inlined_call_operand.vmem [shape: f32[16,1], index: 8, kind: input, shape index: {}]
  %s9 = inlined_call_operand.<no memory space> [shape: f32[1,1], index: 9, kind: input, shape index: {}]
  %s10 = inlined_call_operand.hbm [shape: f32[2,4], index: 10, kind: output, shape index: {}]
  %s11 = sld [smem:[#allocation0]]
  $region50: #{tpu_custom_call.1} parent=0
    _
  %s13 = ssub.s32 1, %s11
  %s14 = scalar_select 0, %s13, %s11
  %v15 = vstv %s9
  %16 = vst [vmem:[#allocation2] sm:$0x1] %v15
  $region1: #{tpu_custom_call.1} parent=0
    #allocation3 [shape = 'u8[1024]{0}', space=vmem, size = 0x400, scoped, tag = 'output window, operand 0, single buffered']
    #allocation4 [shape = 's32[1]{0}', space=sflag, size = 0x4, scoped, tag = 'scoped memory for tpu_custom_call.1']
    %17 = vsyncpa [#allocation4], 0
    // Predicated region
    $region2: #{tpu_custom_call.1} parent=1 // pred_check
      _
    $region3: #{tpu_custom_call.1} parent=1 // pred_check_branch
      %19 = sbr.rel (0) target = $region5
    $region4: #{tpu_custom_call.1} parent=1 // pred_region
      _
    $region5: #{tpu_custom_call.1} parent=1 // pred_fallthru
      _
    // Predicated region
    $region6: #{tpu_custom_call.1} parent=1 // pred_check
      _
    $region7: #{tpu_custom_call.1} parent=1 // pred_check_branch
      %21 = sbr.rel (0) target = $region9
    $region8: #{tpu_custom_call.1} parent=1 // pred_region
      _
    $region9: #{tpu_custom_call.1} parent=1 // pred_fallthru
      _
    // Predicated region
    $region10: #{tpu_custom_call.1} parent=1 // pred_check
      _
    $region11: #{tpu_custom_call.1} parent=1 // pred_check_branch
      %23 = sbr.rel (0) target = $region13
    $region12: #{tpu_custom_call.1} parent=1 // pred_region
      _
    $region13: #{tpu_custom_call.1} parent=1 // pred_fallthru
      _
    // Predicated region
    $region14: #{tpu_custom_call.1} parent=1 // pred_check
      _
    $region15: #{tpu_custom_call.1} parent=1 // pred_check_branch
      %25 = sbr.rel (0) target = $region17
    $region16: #{tpu_custom_call.1} parent=1 // pred_region
      _
    $region17: #{tpu_custom_call.1} parent=1 // pred_fallthru
      _
    // Predicated region
    $region18: #{tpu_custom_call.1} parent=1 // pred_check
      _
    $region19: #{tpu_custom_call.1} parent=1 // pred_check_branch
      %27 = sbr.rel (0) target = $region21
    $region20: #{tpu_custom_call.1} parent=1 // pred_region
      _
    $region21: #{tpu_custom_call.1} parent=1 // pred_fallthru
      _
    // Predicated region
    $region22: #{tpu_custom_call.1} parent=1 // pred_check
      _
    $region23: #{tpu_custom_call.1} parent=1 // pred_check_branch
      %29 = sbr.rel (0) target = $region25
    $region24: #{tpu_custom_call.1} parent=1 // pred_region
      _
    $region25: #{tpu_custom_call.1} parent=1 // pred_fallthru
      _
    // Predicated region
    $region26: #{tpu_custom_call.1} parent=1 // pred_check
      _
    $region27: #{tpu_custom_call.1} parent=1 // pred_check_branch
      %31 = sbr.rel (0) target = $region29
    $region28: #{tpu_custom_call.1} parent=1 // pred_region
      _
    $region29: #{tpu_custom_call.1} parent=1 // pred_fallthru
      _
    // Predicated region
    $region30: #{tpu_custom_call.1} parent=1 // pred_check
      _
    $region31: #{tpu_custom_call.1} parent=1 // pred_check_branch
      %33 = sbr.rel (0) target = $region33
    $region32: #{tpu_custom_call.1} parent=1 // pred_region
      _
    $region33: #{tpu_custom_call.1} parent=1 // pred_fallthru
      _
    // Predicated region
    $region34: #{tpu_custom_call.1} parent=1 // pred_check
      _
    $region35: #{tpu_custom_call.1} parent=1 // pred_check_branch
      %35 = sbr.rel (0) target = $region37
    $region36: #{tpu_custom_call.1} parent=1 // pred_region
      _
    $region37: #{tpu_custom_call.1} parent=1 // pred_fallthru
      _
    // Predicated region
    $region38: #{tpu_custom_call.1} parent=1 // pred_check
      _
    $region39: #{tpu_custom_call.1} parent=1 // pred_check_branch
      %37 = sbr.rel (0) target = $region41
    $region40: #{tpu_custom_call.1} parent=1 // pred_region
      _
    $region41: #{tpu_custom_call.1} parent=1 // pred_fallthru
      _
    %v38 = vld [vmem:[%s0] sm:$0xf]
    %v39 = vld [vmem:[%s1] sm:$0xf]
    %v41 = vrot.slane %v39, 4
    %vm43 = vcmask 1043456
    %v44 = vsel %vm43, %v38, %v41
    %v45 = vld [vmem:[%s2] sm:$0xf]
    %v46 = vld [vmem:[%s3] sm:$0xff]
    %v47 = vld [vmem:[%s3 + $0x8] sm:$0xff]
    %v48 = vld [vmem:[%s3 + $0x10] sm:$0xff]
    %v49 = vld [vmem:[%s3 + $0x18] sm:$0xff]
    %v50 = vld [vmem:[%s4] sm:$0xff]
    %v51 = vld [vmem:[%s4 + $0x8] sm:$0xff]
    %v52 = vld [vmem:[%s4 + $0x10] sm:$0xff]
    %v53 = vld [vmem:[%s4 + $0x18] sm:$0xff]
    %vm54 = vcmask 261120
    %v56 = vsel %vm54, %v50, 0
    %v59 = vsel %vm54, %v51, 0
    %v62 = vsel %vm54, %v52, 0
    %v65 = vsel %vm54, %v53, 0
    %v68 = vsel %vm54, %v45, 0
    %70 = vmatprep.subr.mxu0 0.0
    %71 = vmatpush1.xpose.msra.mxu0 %v68
    %72 = vmatprep.subr.mxu0 0.0
    %73 = vmatpush1.xpose.msra.mxu0 0.0
    %74 = vmatprep.subr.mxu0 0.0
    %75 = vmatpush1.xpose.msra.mxu0 0.0
    %76 = vmatprep.subr.mxu0 0.0
    %77 = vmatpush1.xpose.msra.mxu0 0.0
    %78 = vmatprep.subr.mxu0 0.0
    %79 = vmatpush1.xpose.msra.mxu0 0.0
    %80 = vmatprep.subr.mxu0 0.0
    %81 = vmatpush1.xpose.msra.mxu0 0.0
    %82 = vmatprep.subr.mxu0 0.0
    %83 = vmatpush1.xpose.msra.mxu0 0.0
    %84 = vmatprep.subr.mxu0 0.0
    %85 = vmatpush1.xpose.msra.mxu0 0.0
    %86 = vmatprep.subr.mxu0 0.0
    %87 = vmatpush1.xpose.msra.mxu0 0.0
    %88 = vmatprep.subr.mxu0 0.0
    %89 = vmatpush1.xpose.msra.mxu0 0.0
    %90 = vmatprep.subr.mxu0 0.0
    %91 = vmatpush1.xpose.msra.mxu0 0.0
    %92 = vmatprep.subr.mxu0 0.0
    %93 = vmatpush1.xpose.msra.mxu0 0.0
    %94 = vmatprep.subr.mxu0 0.0
    %95 = vmatpush1.xpose.msra.mxu0 0.0
    %96 = vmatprep.subr.mxu0 0.0
    %97 = vmatpush1.xpose.msra.mxu0 0.0
    %98 = vmatprep.subr.mxu0 0.0
    %99 = vmatpush1.xpose.msra.mxu0 0.0
    %100 = vmatprep.subr.mxu0 0.0
    %101 = vmatpush1.xpose.msra.mxu0 0.0
    %102 = vmatprep.subr.mxu0 0.0
    %103 = vmatpush1.xpose.msra.mxu0 0.0
    %104 = vmatprep.subr.mxu0 0.0
    %105 = vmatpush1.xpose.msra.mxu0 0.0
    %106 = vmatprep.subr.mxu0 0.0
    %107 = vmatpush1.xpose.msra.mxu0 0.0
    %108 = vmatprep.subr.mxu0 0.0
    %109 = vmatpush1.xpose.msra.mxu0 0.0
    %110 = vmatprep.subr.mxu0 0.0
    %111 = vmatpush1.xpose.msra.mxu0 0.0
    %112 = vmatprep.subr.mxu0 0.0
    %113 = vmatpush1.xpose.msra.mxu0 0.0
    %114 = vmatprep.subr.mxu0 0.0
    %115 = vmatpush1.xpose.msra.mxu0 0.0
    %116 = vmatprep.subr.mxu0 0.0
    %117 = vmatpush1.xpose.msra.mxu0 0.0
    %118 = vmatprep.subr.mxu0 0.0
    %119 = vmatpush1.xpose.msra.mxu0 0.0
    %120 = vmatprep.subr.mxu0 0.0
    %121 = vmatpush1.xpose.msra.mxu0 0.0
    %122 = vmatprep.subr.mxu0 0.0
    %123 = vmatpush1.xpose.msra.mxu0 0.0
    %124 = vmatprep.subr.mxu0 0.0
    %125 = vmatpush1.xpose.msra.mxu0 0.0
    %126 = vmatprep.subr.mxu0 0.0
    %127 = vmatpush1.xpose.msra.mxu0 0.0
    %128 = vmatprep.subr.mxu0 0.0
    %129 = vmatpush1.xpose.msra.mxu0 0.0
    %130 = vmatprep.subr.mxu0 0.0
    %131 = vmatpush1.xpose.msra.mxu0 0.0
    %132 = vmatprep.subr.mxu0 0.0
    %133 = vmatpush1.xpose.msra.mxu0 0.0
    %134 = vmatprep.mubr.f32.mxu0 0.0
    %135 = vmatmul.mubr.f32.gmra.mrb[0].mxu0 %v56
    %v136 = vpop.f32.mrb[0].mxu0
    %v137 = vadd.f32 0.0, %v136
    %v138 = vpop.f32.mrb[0].mxu0
    %139 = vmatprep.mubr.f32.mxu0 0.0
    %140 = vmatmul.mubr.f32.gmra.mrb[0].mxu0 %v59
    %v141 = vpop.f32.mrb[0].mxu0
    %v142 = vadd.f32 0.0, %v141
    %v143 = vpop.f32.mrb[0].mxu0
    %144 = vmatprep.mubr.f32.mxu0 0.0
    %145 = vmatmul.mubr.f32.gmra.mrb[0].mxu0 %v62
    %v146 = vpop.f32.mrb[0].mxu0
    %v147 = vadd.f32 0.0, %v146
    %v148 = vpop.f32.mrb[0].mxu0
    %149 = vmatprep.mubr.f32.mxu0 0.0
    %150 = vmatmul.mubr.f32.gmra.mrb[0].mxu0 %v65
    %v151 = vpop.f32.mrb[0].mxu0
    %v152 = vadd.f32 0.0, %v151
    %v153 = vpop.f32.mrb[0].mxu0
    %154 = vdwg.mxu0
    %159 = vrot.lane.b32.xlu0 %v137, 4
    %v160 = vpop.permute.xlu0 %159
    %161 = vrot.lane.b32.xlu0 %v142, 4
    %v162 = vpop.permute.xlu0 %161
    %163 = vrot.lane.b32.xlu0 %v147, 4
    %v164 = vpop.permute.xlu0 %163
    %165 = vrot.lane.b32.xlu0 %v152, 4
    %v166 = vpop.permute.xlu0 %165
    %vm171 = vcmask 31744
    %v172 = vsel %vm171, %v137, %v160
    %v173 = vsel %vm171, %v142, %v162
    %v174 = vsel %vm171, %v147, %v164
    %v175 = vsel %vm171, %v152, %v166
    %vm176 = vcmask 130048
    %v178 = vsel %vm176, %v46, 0
    %v181 = vsel %vm176, %v47, 0
    %v184 = vsel %vm176, %v48, 0
    %v187 = vsel %vm176, %v49, 0
    %v190 = vsel %vm176, %v44, 0
    %192 = vmatprep.subr.mxu0 0.0
    %193 = vmatpush1.xpose.msra.mxu0 %v190
    %194 = vmatprep.subr.mxu0 0.0
    %195 = vmatpush1.xpose.msra.mxu0 0.0
    %196 = vmatprep.subr.mxu0 0.0
    %197 = vmatpush1.xpose.msra.mxu0 0.0
    %198 = vmatprep.subr.mxu0 0.0
    %199 = vmatpush1.xpose.msra.mxu0 0.0
    %200 = vmatprep.subr.mxu0 0.0
    %201 = vmatpush1.xpose.msra.mxu0 0.0
    %202 = vmatprep.subr.mxu0 0.0
    %203 = vmatpush1.xpose.msra.mxu0 0.0
    %204 = vmatprep.subr.mxu0 0.0
    %205 = vmatpush1.xpose.msra.mxu0 0.0
    %206 = vmatprep.subr.mxu0 0.0
    %207 = vmatpush1.xpose.msra.mxu0 0.0
    %208 = vmatprep.subr.mxu0 0.0
    %209 = vmatpush1.xpose.msra.mxu0 0.0
    %210 = vmatprep.subr.mxu0 0.0
    %211 = vmatpush1.xpose.msra.mxu0 0.0
    %212 = vmatprep.subr.mxu0 0.0
    %213 = vmatpush1.xpose.msra.mxu0 0.0
    %214 = vmatprep.subr.mxu0 0.0
    %215 = vmatpush1.xpose.msra.mxu0 0.0
    %216 = vmatprep.subr.mxu0 0.0
    %217 = vmatpush1.xpose.msra.mxu0 0.0
    %218 = vmatprep.subr.mxu0 0.0
    %219 = vmatpush1.xpose.msra.mxu0 0.0
    %220 = vmatprep.subr.mxu0 0.0
    %221 = vmatpush1.xpose.msra.mxu0 0.0
    %222 = vmatprep.subr.mxu0 0.0
    %223 = vmatpush1.xpose.msra.mxu0 0.0
    %224 = vmatprep.subr.mxu0 0.0
    %225 = vmatpush1.xpose.msra.mxu0 0.0
    %226 = vmatprep.subr.mxu0 0.0
    %227 = vmatpush1.xpose.msra.mxu0 0.0
    %228 = vmatprep.subr.mxu0 0.0
    %229 = vmatpush1.xpose.msra.mxu0 0.0
    %230 = vmatprep.subr.mxu0 0.0
    %231 = vmatpush1.xpose.msra.mxu0 0.0
    %232 = vmatprep.subr.mxu0 0.0
    %233 = vmatpush1.xpose.msra.mxu0 0.0
    %234 = vmatprep.subr.mxu0 0.0
    %235 = vmatpush1.xpose.msra.mxu0 0.0
    %236 = vmatprep.subr.mxu0 0.0
    %237 = vmatpush1.xpose.msra.mxu0 0.0
    %238 = vmatprep.subr.mxu0 0.0
    %239 = vmatpush1.xpose.msra.mxu0 0.0
    %240 = vmatprep.subr.mxu0 0.0
    %241 = vmatpush1.xpose.msra.mxu0 0.0
    %242 = vmatprep.subr.mxu0 0.0
    %243 = vmatpush1.xpose.msra.mxu0 0.0
    %244 = vmatprep.subr.mxu0 0.0
    %245 = vmatpush1.xpose.msra.mxu0 0.0
    %246 = vmatprep.subr.mxu0 0.0
    %247 = vmatpush1.xpose.msra.mxu0 0.0
    %248 = vmatprep.subr.mxu0 0.0
    %249 = vmatpush1.xpose.msra.mxu0 0.0
    %250 = vmatprep.subr.mxu0 0.0
    %251 = vmatpush1.xpose.msra.mxu0 0.0
    %252 = vmatprep.subr.mxu0 0.0
    %253 = vmatpush1.xpose.msra.mxu0 0.0
    %254 = vmatprep.subr.mxu0 0.0
    %255 = vmatpush1.xpose.msra.mxu0 0.0
    %256 = vmatprep.mubr.f32.mxu0 0.0
    %257 = vmatmul.mubr.f32.gmra.mrb[0].mxu0 %v178
    %v258 = vpop.f32.mrb[0].mxu0
    %v259 = vadd.f32 %v172, %v258
    %v260 = vpop.f32.mrb[0].mxu0
    %261 = vmatprep.mubr.f32.mxu0 0.0
    %262 = vmatmul.mubr.f32.gmra.mrb[0].mxu0 %v181
    %v263 = vpop.f32.mrb[0].mxu0
    %v264 = vadd.f32 %v173, %v263
    %v265 = vpop.f32.mrb[0].mxu0
    %266 = vmatprep.mubr.f32.mxu0 0.0
    %267 = vmatmul.mubr.f32.gmra.mrb[0].mxu0 %v184
    %v268 = vpop.f32.mrb[0].mxu0
    %v269 = vadd.f32 %v174, %v268
    %v270 = vpop.f32.mrb[0].mxu0
    %271 = vmatprep.mubr.f32.mxu0 0.0
    %272 = vmatmul.mubr.f32.gmra.mrb[0].mxu0 %v187
    %v273 = vpop.f32.mrb[0].mxu0
    %v274 = vadd.f32 %v175, %v273
    %v275 = vpop.f32.mrb[0].mxu0
    %276 = vdwg.mxu0
    %v277 = vld [vmem:[%s5] sm:$0xff]
    %v278 = vld [vmem:[%s5 + $0x8] sm:$0xff]
    %v279 = vld [vmem:[%s5 + $0x10] sm:$0xff]
    %v280 = vld [vmem:[%s5 + $0x18] sm:$0xff]
    %282 = vset.pattern.permute.xlu0 0
    %283 = vperm.xlu0 %282, %v277
    %v284 = vpop.permute.xlu0 %283
    %287 = vset.pattern.permute.xlu0 0
    %288 = vperm.xlu0 %287, %v278
    %v289 = vpop.permute.xlu0 %288
    %292 = vset.pattern.permute.xlu0 0
    %293 = vperm.xlu0 %292, %v279
    %v294 = vpop.permute.xlu0 %293
    %297 = vset.pattern.permute.xlu0 0
    %298 = vperm.xlu0 %297, %v280
    %v299 = vpop.permute.xlu0 %298
    %v301 = vadd.f32 %v259, %v284
    %v302 = vadd.f32 %v264, %v289
    %v303 = vadd.f32 %v269, %v294
    %v304 = vadd.f32 %v274, %v299
    %v305 = vmax.f32 %v301, 0.0
    %v306 = vmax.f32 %v302, 0.0
    %v307 = vmax.f32 %v303, 0.0
    %v308 = vmax.f32 %v304, 0.0
    %vm309 = vcmask 64512
    %v310 = vsel %vm309, %v305, 0.0
    %311 = vadd.xlane.f32.xlu0 %v310
    %v312 = vpop.xlane.xlu0 %311
    %v313 = vsel %vm309, %v306, 0.0
    %314 = vadd.xlane.f32.xlu0 %v313
    %v315 = vpop.xlane.xlu0 %314
    %v316 = vsel %vm309, %v307, 0.0
    %317 = vadd.xlane.f32.xlu0 %v316
    %v318 = vpop.xlane.xlu0 %317
    %v319 = vsel %vm309, %v308, 0.0
    %320 = vadd.xlane.f32.xlu0 %v319
    %v321 = vpop.xlane.xlu0 %320
    %v322 = vmul.f32 %v305, %v305
    %v323 = vmul.f32 %v306, %v306
    %v324 = vmul.f32 %v307, %v307
    %v325 = vmul.f32 %v308, %v308
    %v326 = vsel %vm309, %v322, 0.0
    %327 = vadd.xlane.f32.xlu0 %v326
    %v328 = vpop.xlane.xlu0 %327
    %v329 = vsel %vm309, %v323, 0.0
    %330 = vadd.xlane.f32.xlu0 %v329
    %v331 = vpop.xlane.xlu0 %330
    %v332 = vsel %vm309, %v324, 0.0
    %333 = vadd.xlane.f32.xlu0 %v332
    %v334 = vpop.xlane.xlu0 %333
    %v335 = vsel %vm309, %v325, 0.0
    %336 = vadd.xlane.f32.xlu0 %v335
    %v337 = vpop.xlane.xlu0 %336
    %v338 = vmul.f32 %v312, 0.125
    %v339 = vmul.f32 %v315, 0.125
    %v340 = vmul.f32 %v318, 0.125
    %v341 = vmul.f32 %v321, 0.125
    %v342 = vmul.f32 %v328, 0.125
    %v343 = vmul.f32 %v331, 0.125
    %v344 = vmul.f32 %v334, 0.125
    %v345 = vmul.f32 %v337, 0.125
    %v346 = vmul.f32 %v338, %v338
    %v347 = vmul.f32 %v339, %v339
    %v348 = vmul.f32 %v340, %v340
    %v349 = vmul.f32 %v341, %v341
    %v350 = vsub.f32 %v342, %v346
    %v351 = vsub.f32 %v343, %v347
    %v352 = vsub.f32 %v344, %v348
    %v353 = vsub.f32 %v345, %v349
    %v354 = vmax.f32 %v350, 0.0
    %v355 = vmax.f32 %v351, 0.0
    %v356 = vmax.f32 %v352, 0.0
    %v357 = vmax.f32 %v353, 0.0
    %v358 = vsub.f32 %v305, %v338
    %v359 = vsub.f32 %v306, %v339
    %v360 = vsub.f32 %v307, %v340
    %v361 = vsub.f32 %v308, %v341
    %v362 = vadd.f32 %v354, 1e-05
    %v363 = vadd.f32 %v355, 1e-05
    %v364 = vadd.f32 %v356, 1e-05
    %v365 = vadd.f32 %v357, 1e-05
    %v366 = vrsqrt.pop %v362
    %v367 = vrsqrt.pop %v363
    %v368 = vrsqrt.pop %v364
    %v369 = vrsqrt.pop %v365
    %v370 = vmul.f32 %v358, %v366
    %v371 = vmul.f32 %v359, %v367
    %v372 = vmul.f32 %v360, %v368
    %v373 = vmul.f32 %v361, %v369
    %v374 = vld [vmem:[%s6] sm:$0xff]
    %v375 = vld [vmem:[%s6 + $0x8] sm:$0xff]
    %v376 = vld [vmem:[%s7] sm:$0xff]
    %v377 = vld [vmem:[%s7 + $0x8] sm:$0xff]
    %379 = vset.pattern.permute.xlu0 0
    %380 = vperm.xlu0 %379, %v376
    %v381 = vpop.permute.xlu0 %380
    %384 = vset.pattern.permute.xlu0 0
    %385 = vperm.xlu0 %384, %v377
    %v386 = vpop.permute.xlu0 %385
    %v389 = vsel %vm54, %v374, 0
    %v392 = vsel %vm54, %v375, 0
    %394 = vmatprep.subr.mxu0 0.0
    %395 = vmatpush1.msra.mxu0 %v370
    %396 = vmatprep.subr.mxu0 0.0
    %397 = vmatpush1.msra.mxu0 %v371
    %398 = vmatprep.subr.mxu0 0.0
    %399 = vmatpush1.msra.mxu0 %v372
    %400 = vmatprep.subr.mxu0 0.0
    %401 = vmatpush1.msra.mxu0 %v373
    %402 = vmatprep.subr.mxu0 0.0
    %403 = vmatpush1.msra.mxu0 0.0
    %404 = vmatprep.subr.mxu0 0.0
    %405 = vmatpush1.msra.mxu0 0.0
    %406 = vmatprep.subr.mxu0 0.0
    %407 = vmatpush1.msra.mxu0 0.0
    %408 = vmatprep.subr.mxu0 0.0
    %409 = vmatpush1.msra.mxu0 0.0
    %410 = vmatprep.subr.mxu0 0.0
    %411 = vmatpush1.msra.mxu0 0.0
    %412 = vmatprep.subr.mxu0 0.0
    %413 = vmatpush1.msra.mxu0 0.0
    %414 = vmatprep.subr.mxu0 0.0
    %415 = vmatpush1.msra.mxu0 0.0
    %416 = vmatprep.subr.mxu0 0.0
    %417 = vmatpush1.msra.mxu0 0.0
    %418 = vmatprep.subr.mxu0 0.0
    %419 = vmatpush1.msra.mxu0 0.0
    %420 = vmatprep.subr.mxu0 0.0
    %421 = vmatpush1.msra.mxu0 0.0
    %422 = vmatprep.subr.mxu0 0.0
    %423 = vmatpush1.msra.mxu0 0.0
    %424 = vmatprep.subr.mxu0 0.0
    %425 = vmatpush1.msra.mxu0 0.0
    %426 = vmatprep.subr.mxu0 0.0
    %427 = vmatpush1.msra.mxu0 0.0
    %428 = vmatprep.subr.mxu0 0.0
    %429 = vmatpush1.msra.mxu0 0.0
    %430 = vmatprep.subr.mxu0 0.0
    %431 = vmatpush1.msra.mxu0 0.0
    %432 = vmatprep.subr.mxu0 0.0
    %433 = vmatpush1.msra.mxu0 0.0
    %434 = vmatprep.subr.mxu0 0.0
    %435 = vmatpush1.msra.mxu0 0.0
    %436 = vmatprep.subr.mxu0 0.0
    %437 = vmatpush1.msra.mxu0 0.0
    %438 = vmatprep.subr.mxu0 0.0
    %439 = vmatpush1.msra.mxu0 0.0
    %440 = vmatprep.subr.mxu0 0.0
    %441 = vmatpush1.msra.mxu0 0.0
    %442 = vmatprep.subr.mxu0 0.0
    %443 = vmatpush1.msra.mxu0 0.0
    %444 = vmatprep.subr.mxu0 0.0
    %445 = vmatpush1.msra.mxu0 0.0
    %446 = vmatprep.subr.mxu0 0.0
    %447 = vmatpush1.msra.mxu0 0.0
    %448 = vmatprep.subr.mxu0 0.0
    %449 = vmatpush1.msra.mxu0 0.0
    %450 = vmatprep.subr.mxu0 0.0
    %451 = vmatpush1.msra.mxu0 0.0
    %452 = vmatprep.subr.mxu0 0.0
    %453 = vmatpush1.msra.mxu0 0.0
    %454 = vmatprep.subr.mxu0 0.0
    %455 = vmatpush1.msra.mxu0 0.0
    %456 = vmatprep.subr.mxu0 0.0
    %457 = vmatpush1.msra.mxu0 0.0
    %458 = vmatprep.mubr.f32.mxu0 0.0
    %459 = vmatmul.mubr.f32.gmra.mrb[0].mxu0 %v389
    %v460 = vpop.f32.mrb[0].mxu0
    %v461 = vadd.f32 %v381, %v460
    %v462 = vpop.f32.mrb[0].mxu0
    %463 = vmatprep.mubr.f32.mxu0 0.0
    %464 = vmatmul.mubr.f32.gmra.mrb[0].mxu0 %v392
    %v465 = vpop.f32.mrb[0].mxu0
    %v466 = vadd.f32 %v386, %v465
    %v467 = vpop.f32.mrb[0].mxu0
    %468 = vdwg.mxu0
    %v469 = vmax.f32 %v461, 0.0
    %v470 = vmax.f32 %v466, 0.0
    %v471 = vsel %vm309, %v469, 0.0
    %472 = vadd.xlane.f32.xlu0 %v471
    %v473 = vpop.xlane.xlu0 %472
    %v474 = vsel %vm309, %v470, 0.0
    %475 = vadd.xlane.f32.xlu0 %v474
    %v476 = vpop.xlane.xlu0 %475
    %v477 = vmul.f32 %v469, %v469
    %v478 = vmul.f32 %v470, %v470
    %v479 = vsel %vm309, %v477, 0.0
    %480 = vadd.xlane.f32.xlu0 %v479
    %v481 = vpop.xlane.xlu0 %480
    %v482 = vsel %vm309, %v478, 0.0
    %483 = vadd.xlane.f32.xlu0 %v482
    %v484 = vpop.xlane.xlu0 %483
    %v485 = vmul.f32 %v473, 0.125
    %v486 = vmul.f32 %v476, 0.125
    %v487 = vmul.f32 %v481, 0.125
    %v488 = vmul.f32 %v484, 0.125
    %v489 = vmul.f32 %v485, %v485
    %v490 = vmul.f32 %v486, %v486
    %v491 = vsub.f32 %v487, %v489
    %v492 = vsub.f32 %v488, %v490
    %v493 = vmax.f32 %v491, 0.0
    %v494 = vmax.f32 %v492, 0.0
    %v495 = vsub.f32 %v469, %v485
    %v496 = vsub.f32 %v470, %v486
    %v497 = vadd.f32 %v493, 1e-05
    %v498 = vadd.f32 %v494, 1e-05
    %v499 = vrsqrt.pop %v497
    %v500 = vrsqrt.pop %v498
    %v501 = vmul.f32 %v495, %v499
    %v502 = vmul.f32 %v496, %v500
    %v503 = vld [vmem:[%s8] sm:$0xff]
    %v504 = vld [vmem:[%s8 + $0x8] sm:$0xff]
    %506 = vset.pattern.permute.xlu0 0
    %507 = vperm.xlu0 %506, %v503
    %v508 = vpop.permute.xlu0 %507
    %511 = vset.pattern.permute.xlu0 0
    %512 = vperm.xlu0 %511, %v504
    %v513 = vpop.permute.xlu0 %512
    %v515 = vmul.f32 %v501, %v508
    %v516 = vmul.f32 %v502, %v513
    %v517 = vsel %vm171, %v515, 0.0
    %v518 = vsel %vm171, %v516, 0.0
    %v519 = vadd.f32 %v517, %v518
    %v520 = vrot.slane %v519, 4
    %v521 = vadd.f32 %v519, %v520
    %v522 = vrot.slane %v521, 2
    %v523 = vadd.f32 %v521, %v522
    %v524 = vrot.slane %v523, 1
    %v525 = vadd.f32 %v523, %v524
    %vm526 = vcmask 64544
    %v527 = vsel %vm526, %v515, 0.0
    %v528 = vsel %vm526, %v516, 0.0
    %v529 = vadd.f32 %v527, %v528
    %v530 = vrot.slane %v529, 4
    %v531 = vadd.f32 %v529, %v530
    %v532 = vrot.slane %v531, 2
    %v533 = vadd.f32 %v531, %v532
    %v534 = vrot.slane %v533, 1
    %v535 = vadd.f32 %v533, %v534
    %537 = vrot.lane.b32.xlu0 %v535, 124
    %v538 = vpop.permute.xlu0 %537
    %vm540 = vcmask 1040384
    %v541 = vsel %vm540, %v525, %v538
    %v542 = vld [vmem:[#allocation2] sm:$0x1]
    %v544 = vlaneseq
    %v545 = vshrl.u32 %v544, 7
    %v546 = vsub.s32 0, %v545
    %v547 = vrot.slane %v542, %v546
    %548 = vset.pattern.permute.xlu0 0
    %549 = vperm.xlu0 %548, %v547
    %v550 = vpop.permute.xlu0 %549
    %v552 = vadd.f32 %v541, %v550
    %vm553 = vcmask 25600
    %v554 = vsel %vm553, %v552, -inf
    %555 = vmax.xlane.f32.xlu0 %v554
    %v556 = vpop.xlane.xlu0 %555
    %v557 = vsub.f32 %v552, %v556
    %v558 = vmul.f32 %v557, 1.442695
    %v559 = vpow.pop %v558
    %v560 = vsel %vm553, %v559, 0.0
    %561 = vadd.xlane.f32.xlu0 %v560
    %v562 = vpop.xlane.xlu0 %561
    %v563 = vrcp.pop %v562
    %v564 = vmul.f32 %v559, %v563
    %565 = vst.msk [vmem:[#allocation3] sm:$0x3] %vm553, %v564
    // Predicated region
    $region42: #{tpu_custom_call.1} parent=1 // pred_check
      _
    $region43: #{tpu_custom_call.1} parent=1 // pred_check_branch
      %567 = sbr.rel (0) target = $region45
    $region44: #{tpu_custom_call.1} parent=1 // pred_region
      %s569 = ssub.s32 32, 32
      %570 = vsyncadd [#allocation4], %s569
      %s572 = sshll.u32 [#allocation3], 4
      %s573 = int_to_ptr.vmem [resolvable:$true] %s572
      %575 = dma.vmem_to_hbm [thread:$0]  %s573, 32, %s10, [#allocation4]
    $region45: #{tpu_custom_call.1} parent=1 // pred_fallthru
      _
    // Predicated region
    $region46: #{tpu_custom_call.1} parent=1 // pred_check
      _
    $region47: #{tpu_custom_call.1} parent=1 // pred_check_branch
      %577 = sbr.rel (0) target = $region49
    $region48: #{tpu_custom_call.1} parent=1 // pred_region
      %578 = dma.done [#allocation4], 32
    $region49: #{tpu_custom_call.1} parent=1 // pred_fallthru
      _
    %579 = vsyncpa [#allocation4], 1

</llo_original>
